<compile_context>
chip_gen: v5e
topology: v5e:2x2
jax: 0.10.0
libtpu: 0.0.40
codegen_flags: <defaults>
</compile_context>

<pallas_src>
import jax
import jax.numpy as jnp
from jax.experimental import pallas as pl
from jax.experimental.pallas import tpu as pltpu


def _complex_relu_kernel(real_ref, img_ref, out_real_ref, out_img_ref):
    real = real_ref[...]
    img = img_ref[...]
    # mask = 1.0 * (real >= 0); multiply keeps exact PyTorch semantics.
    mask = (real >= 0).astype(real.dtype)
    out_real_ref[...] = mask * real
    out_img_ref[...] = mask * img


def _sublane_multiple(dtype):
    # Rows of a block must be a multiple of the sublane packing (or equal N):
    # 8 for 4-byte, 16 for 2-byte, 32 for 1-byte dtypes.
    itemsize = jnp.dtype(dtype).itemsize
    return max(8, 32 // itemsize)


def _round_up(x, m):
    return ((x + m - 1) // m) * m


def _physical_vmem_bytes():
    # Generation-aware VMEM cap (v5e/v6e: 128 MiB, v7x: 64 MiB per TC).
    try:
        return int(pltpu.get_tpu_info().vmem_capacity_bytes)
    except Exception:
        return 64 * 1024 * 1024  # conservative fallback (v7x per-TC size)


# Target per-array tile size.  4 tiled arrays x 2 pipeline buffers -> ~16 MiB
# resident, which fits v6e/v7x's 32 MiB scoped default; on v5e (16 MiB default)
# we raise vmem_limit_bytes explicitly below.
_TARGET_TILE_BYTES = 2 * 1024 * 1024
# Below this many bytes per array, plain jnp beats a standalone pallas_call.
_SMALL_INPUT_BYTES = 2 * 1024 * 1024


def _lane_dense_2d(real, img):
    """Return a lane-dense 2-D view (rows, cols) of real/img (row-major reshape,
    semantics-preserving for elementwise ops)."""
    total = real.size
    last = real.shape[-1] if real.ndim >= 1 else 1
    if real.ndim == 2 and last % 128 == 0:
        return real, img
    cols = None
    for cand in (1024, 512, 256, 128):
        if total >= cand and total % cand == 0:
            cols = cand
            break
    if cols is None:
        # Fallback: keep the original trailing dim (stores may be masked).
        cols = last if last > 0 else 1
    return real.reshape(-1, cols), img.reshape(-1, cols)


def complex_relu(real, img=None, *, block_rows=None, block_cols=None,
                 donate_inputs=False, force_pallas=False):
    """Pallas complex ReLU.  Accepts (real, img) or a tuple/stacked pair.

    block_rows / block_cols: optional tile overrides (rounded to legal multiples).
    donate_inputs: if True, outputs alias the input HBM buffers.
    force_pallas:  bypass the small-input jnp fast path (used by tests).
    """
    if img is None:
        img = real[1]
        real = real[0]
    assert real.shape == img.shape and real.dtype == img.dtype

    orig_shape = real.shape
    dtype = real.dtype
    itemsize = jnp.dtype(dtype).itemsize
    total_bytes = real.size * itemsize

    # Small-input fast path: launch overhead dominates and XLA can fuse this.
    if not force_pallas and total_bytes <= _SMALL_INPUT_BYTES:
        mask = (real >= 0).astype(dtype)
        return mask * real, mask * img

    # Lane-dense 2-D view (last dim a multiple of 128 whenever possible).
    real2, img2 = _lane_dense_2d(real, img)
    N, F = real2.shape
    sub = _sublane_multiple(dtype)

    # ---- column tiling (only needed for very wide feature dims) ----
    if block_cols is None:
        if sub * F * itemsize > _TARGET_TILE_BYTES and F > 128:
            bc = max(128, (_TARGET_TILE_BYTES // (sub * itemsize)) // 128 * 128)
            block_cols = min(F, bc)
        else:
            block_cols = F
    else:
        block_cols = min(F, int(block_cols))
        if block_cols != F and block_cols % 128 != 0:
            block_cols = min(F, _round_up(block_cols, 128))

    # ---- row tiling ----
    if block_rows is None:
        rows = max(1, _TARGET_TILE_BYTES // max(1, block_cols * itemsize))
        rows = max(sub, (rows // sub) * sub)
        if rows >= N:
            block_rows = N
            # Guarantee >= 2 grid steps when possible so v7x megacore engages.
            if N > sub:
                half = _round_up((N + 1) // 2, sub)
                if half < N:
                    block_rows = half
        else:
            block_rows = rows
    else:
        block_rows = int(block_rows)
        if block_rows >= N:
            block_rows = N
        elif block_rows % sub != 0:
            block_rows = min(N, _round_up(block_rows, sub))

    # ---- VMEM budget: clamp tile + set an explicit, generation-aware limit ----
    physical = _physical_vmem_bytes()
    budget = int(0.70 * physical)  # resident budget for 4 arrays x 2 buffers
    per_row_bytes = 8 * block_cols * itemsize
    max_rows = max(sub, (budget // max(1, per_row_bytes)) // sub * sub)
    if block_rows > max_rows:
        block_rows = max_rows

    vmem_needed = 8 * block_rows * block_cols * itemsize
    vmem_limit = max(vmem_needed,
                     min(vmem_needed + (8 << 20), int(0.85 * physical)))

    grid = (pl.cdiv(N, block_rows), pl.cdiv(F, block_cols))
    spec = pl.BlockSpec((block_rows, block_cols), lambda i, j: (i, j))

    pallas_kwargs = {}
    if donate_inputs:
        # Reuse the input HBM buffers for the outputs (no fresh allocations).
        pallas_kwargs["input_output_aliases"] = {0: 0, 1: 1}

    out_real, out_img = pl.pallas_call(
        _complex_relu_kernel,
        out_shape=(
            jax.ShapeDtypeStruct((N, F), dtype),
            jax.ShapeDtypeStruct((N, F), dtype),
        ),
        grid_spec=pltpu.PrefetchScalarGridSpec(
            num_scalar_prefetch=0,
            grid=grid,
            in_specs=[spec, spec],
            out_specs=[spec, spec],
        ),
        compiler_params=pltpu.CompilerParams(
            dimension_semantics=("parallel", "parallel"),
            vmem_limit_bytes=int(vmem_limit),
        ),
        **pallas_kwargs,
    )(real2, img2)

    if out_real.shape != orig_shape:
        out_real = out_real.reshape(orig_shape)
        out_img = out_img.reshape(orig_shape)
    return out_real, out_img


def _reference(real, img):
    mask = (real >= 0).astype(real.dtype)
    return mask * real, mask * img


if __name__ == "__main__":
    key = jax.random.PRNGKey(0)
    k1, k2, k3, k4, k5, k6 = jax.random.split(key, 6)

    # Small node-feature matrices: 64 nodes x 128 features (Pallas path forced).
    real = jax.random.normal(k1, (64, 128), dtype=jnp.float32)
    img = jax.random.normal(k2, (64, 128), dtype=jnp.float32)

    out_real, out_img = complex_relu(real, img, force_pallas=True)
    jax.block_until_ready((out_real, out_img))
    ref_real, ref_img = _reference(real, img)
    assert jnp.allclose(out_real, ref_real)
    assert jnp.allclose(out_img, ref_img)

    # Tuple-input path (img=None branch of forward).
    out_real2, out_img2 = complex_relu((real, img), force_pallas=True)
    jax.block_until_ready((out_real2, out_img2))
    assert jnp.allclose(out_real2, out_real)
    assert jnp.allclose(out_img2, out_img)

    # Small-input fast path (plain jnp) must match the kernel exactly.
    fr, fi = complex_relu(real, img)
    jax.block_until_ready((fr, fi))
    assert jnp.allclose(fr, ref_real)
    assert jnp.allclose(fi, ref_img)

    # Multi-step grid with a ragged final block (tiled/pipelined path).
    real_b = jax.random.normal(k3, (520, 128), dtype=jnp.float32)
    img_b = jax.random.normal(k4, (520, 128), dtype=jnp.float32)
    out_real_b, out_img_b = complex_relu(real_b, img_b, block_rows=128,
                                         force_pallas=True)
    jax.block_until_ready((out_real_b, out_img_b))
    ref_real_b, ref_img_b = _reference(real_b, img_b)
    assert jnp.allclose(out_real_b, ref_real_b)
    assert jnp.allclose(out_img_b, ref_img_b)

    # Non-128-aligned feature dim: exercises the lane-dense reshape path.
    real_c = jax.random.normal(k5, (48, 96), dtype=jnp.float32)
    img_c = jax.random.normal(k6, (48, 96), dtype=jnp.float32)
    out_real_c, out_img_c = complex_relu(real_c, img_c, force_pallas=True)
    jax.block_until_ready((out_real_c, out_img_c))
    ref_real_c, ref_img_c = _reference(real_c, img_c)
    assert jnp.allclose(out_real_c, ref_real_c)
    assert jnp.allclose(out_img_c, ref_img_c)
    assert out_real_c.shape == (48, 96)

    print("KERNEL_OK")
</pallas_src>

<mosaic_0001>
module attributes {stable_mosaic.version = 11 : i64} {
  func.func @_complex_relu_kernel(%arg0: i32, %arg1: i32, %arg2: memref<32x128xf32, #tpu.memory_space<vmem>>, %arg3: memref<32x128xf32, #tpu.memory_space<vmem>>, %arg4: memref<32x128xf32, #tpu.memory_space<vmem>>, %arg5: memref<32x128xf32, #tpu.memory_space<vmem>>) attributes {dimension_semantics = [#tpu.dimension_semantics<parallel>, #tpu.dimension_semantics<parallel>], iteration_bounds = array<i64: 2, 1>, scalar_prefetch = 0 : i64, scratch_operands = 0 : i64, tpu.core_type = #tpu.core_type<tc>, window_params = [{transform_indices = @transform_0, window_bounds = array<i64: 32, 128>}, {transform_indices = @transform_1, window_bounds = array<i64: 32, 128>}, {transform_indices = @transform_2, window_bounds = array<i64: 32, 128>}, {transform_indices = @transform_3, window_bounds = array<i64: 32, 128>}]} {
    %c0 = arith.constant 0 : index
    %c0_0 = arith.constant 0 : index
    %0 = vector.load %arg2[%c0, %c0_0] : memref<32x128xf32, #tpu.memory_space<vmem>>, vector<32x128xf32>
    %c0_1 = arith.constant 0 : index
    %c0_2 = arith.constant 0 : index
    %1 = vector.load %arg3[%c0_1, %c0_2] : memref<32x128xf32, #tpu.memory_space<vmem>>, vector<32x128xf32>
    %cst = arith.constant 0.000000e+00 : f32
    %2 = vector.broadcast %cst : f32 to vector<32x128xf32>
    %3 = arith.cmpf oge, %0, %2 : vector<32x128xf32>
    %4 = arith.extui %3 : vector<32x128xi1> to vector<32x128xi32>
    %5 = arith.sitofp %4 : vector<32x128xi32> to vector<32x128xf32>
    %6 = arith.mulf %5, %0 : vector<32x128xf32>
    %c0_3 = arith.constant 0 : index
    %c0_4 = arith.constant 0 : index
    %7 = vector.load %arg4[%c0_3, %c0_4] : memref<32x128xf32, #tpu.memory_space<vmem>>, vector<32x128xf32>
    tpu.vector_store %arg4[%c0_3, %c0_4], %6 {strides = array<i32>} : memref<32x128xf32, #tpu.memory_space<vmem>>, vector<32x128xf32>,
    %8 = arith.mulf %5, %1 : vector<32x128xf32>
    %c0_5 = arith.constant 0 : index
    %c0_6 = arith.constant 0 : index
    %9 = vector.load %arg5[%c0_5, %c0_6] : memref<32x128xf32, #tpu.memory_space<vmem>>, vector<32x128xf32>
    tpu.vector_store %arg5[%c0_5, %c0_6], %8 {strides = array<i32>} : memref<32x128xf32, #tpu.memory_space<vmem>>, vector<32x128xf32>,
    return
  }
  func.func @transform_0(%arg0: i32, %arg1: i32) -> (i32, i32) {
    %c0_i32 = arith.constant 0 : i32
    return %arg0, %arg1 : i32, i32
  }
  func.func @transform_1(%arg0: i32, %arg1: i32) -> (i32, i32) {
    %c0_i32 = arith.constant 0 : i32
    return %arg0, %arg1 : i32, i32
  }
  func.func @transform_2(%arg0: i32, %arg1: i32) -> (i32, i32) {
    %c0_i32 = arith.constant 0 : i32
    return %arg0, %arg1 : i32, i32
  }
  func.func @transform_3(%arg0: i32, %arg1: i32) -> (i32, i32) {
    %c0_i32 = arith.constant 0 : i32
    return %arg0, %arg1 : i32, i32
  }
}

</mosaic_0001>

<llo_original>
// kernel: tpu_custom_call.1
$region0: #{tpu_custom_call.1}
  #allocation0 [shape = 'u32[]', space=smem, size = 0x4, offset = 0x4, fixed_abs, tag = 'smem constant byte address 0x4 - core index']
  #allocation1 [shape = 'u32[72,128]{1,0:T(1,128)}', space=vmem, size = 0x9000, scoped, tag = 'internal scratch']
  %s0 = inlined_call_operand.hbm [shape: f32[64,128], index: 0, kind: input, shape index: {}]
  %s1 = inlined_call_operand.hbm [shape: f32[64,128], index: 1, kind: input, shape index: {}]
  %s2 = inlined_call_operand.hbm [shape: f32[64,128], index: 2, kind: output, shape index: {0}]
  %s3 = inlined_call_operand.hbm [shape: f32[64,128], index: 3, kind: output, shape index: {1}]
  %4 = xla_tuple %s2, %s3
  %s5 = sld [smem:[#allocation0]]
  $region57: #{tpu_custom_call.1} parent=0
    _
  %s7 = ssub.s32 1, %s5
  %s8 = scalar_select 0, %s7, %s5
  $region1: #{tpu_custom_call.1} parent=0
    #allocation2 [shape = 'u8[32768]{0}', space=vmem, size = 0x8000, scoped, tag = 'input window, operand 0']
    #allocation3 [shape = 's32[2]{0}', space=sflag, size = 0x8, scoped, tag = 'scoped memory for tpu_custom_call.1']
    #allocation4 [shape = 's32[2]{0}', space=sflag, size = 0x8, scoped, tag = 'scoped memory for tpu_custom_call.1']
    #allocation5 [shape = 'u8[32768]{0}', space=vmem, size = 0x8000, scoped, tag = 'input window, operand 1']
    #allocation6 [shape = 's32[2]{0}', space=sflag, size = 0x8, scoped, tag = 'scoped memory for tpu_custom_call.1']
    #allocation7 [shape = 'u8[32768]{0}', space=vmem, size = 0x8000, scoped, tag = 'output window, operand 0']
    #allocation8 [shape = 'u8[32768]{0}', space=vmem, size = 0x8000, scoped, tag = 'output window, operand 1']
    #allocation9 [shape = 's32[2]{0}', space=sflag, size = 0x8, scoped, tag = 'scoped memory for tpu_custom_call.1']
    %9 = vsyncpa [#allocation3], 0
    %s10 = scalar_lea.sflag [#allocation3], 1
    %11 = vsyncpa %s10, 0
    %12 = vsyncpa [#allocation6], 0
    %s13 = scalar_lea.sflag [#allocation6], 1
    %14 = vsyncpa %s13, 0
    %15 = vsyncpa [#allocation4], 0
    %s16 = scalar_lea.sflag [#allocation4], 1
    %17 = vsyncpa %s16, 0
    %18 = vsyncpa [#allocation9], 0
    %s19 = scalar_lea.sflag [#allocation9], 1
    %20 = vsyncpa %s19, 0
    loop: start=0, step=1, limit=4
    $region2: #{tpu_custom_call.1} parent=1 // loop_pre_header
      _
    $region3: #{tpu_custom_call.1} parent=1 // loop_header
      %s22 = sphi 0, %s26
      %p23 = scmp.ge.s32.totalorder %s22, 4
      %s29 = sphi 0, %s41
      %s30 = sphi 0, %s37
      %s31 = sphi 0, %s29
      %s32 = sphi 0, %s30
      %s33 = sphi 0, %s31
      %s34 = sphi 0, %s32
      %s46 = sphi 0, %s48
      %s49 = sphi 0, %s46
      %s50 = sphi 0, %s49
      %s66 = sphi 0, %s50
      %s74 = sphi 0, %s76
      %s77 = sphi 0, %s74
      %s78 = sphi 0, %s77
      %s94 = sphi 0, %s78
      %s102 = sphi 0, %s104
      %s105 = sphi 0, %s102
      %s106 = sphi 0, %s105
      %s122 = sphi 0, %s106
      %s130 = sphi 0, %s132
      %s133 = sphi 0, %s130
      %s134 = sphi 0, %s133
      %s150 = sphi 0, %s134
    $region4: #{tpu_custom_call.1} parent=1 // loop_header_branch
      %25 = sbr.rel (%p23) target = $region8
    $region5: #{tpu_custom_call.1} parent=1 // loop_body
      %s27 = ssub.s32 %s22, 1
      %s28 = ssub.s32 %s22, 2
      %s35 = sadd.s32 1, %s30
      %p36 = scmp.ge.s32.totalorder %s35, 1
      %s37 = scalar_select %p36, 0, %s35
      %s38 = sadd.s32 1, %s29
      %s39 = scalar_select %p36, %s38, %s29
      %p40 = scmp.ge.s32.totalorder %s39, 2
      %s41 = scalar_select %p40, 0, %s39
      %s42 = ssub.s32 %s29, %s41
      %s43 = ssub.s32 %s30, %s37
      %s44 = sor.u32 %s42, %s43
      %p45 = scmp.eq.s32.totalorder %s44, 0
      %s47 = sadd.s32 %s46, 1
      %s48 = scalar_select %p45, %s46, %s47
      %p51 = pneg %p45
      %p52 = scmp.eq.s32.totalorder %s22, 1
      %p53 = por %p51, %p52
      %p54 = scmp.ne.s32.totalorder %s46, %s49
      %p55 = scmp.eq.s32.totalorder %s22, 0
      %p56 = por %p54, %p55
      %p57 = scmp.ne.s32.totalorder %s46, %s49
      %p58 = scmp.eq.s32.totalorder %s27, 1
      %p59 = por %p57, %p58
      %p60 = scmp.ne.s32.totalorder %s49, %s50
      %p61 = scmp.eq.s32.totalorder %s27, 0
      %p62 = por %p60, %p61
      %p63 = scmp.ne.s32.totalorder %s49, %s50
      %p64 = scmp.eq.s32.totalorder %s28, 1
      %p65 = por %p63, %p64
      %p67 = scmp.ne.s32.totalorder %s50, %s66
      %p68 = scmp.eq.s32.totalorder %s28, 0
      %p69 = por %p67, %p68
      %s70 = ssub.s32 %s29, %s41
      %s71 = ssub.s32 %s30, %s37
      %s72 = sor.u32 %s70, %s71
      %p73 = scmp.eq.s32.totalorder %s72, 0
      %s75 = sadd.s32 %s74, 1
      %s76 = scalar_select %p73, %s74, %s75
      %p79 = pneg %p73
      %p80 = scmp.eq.s32.totalorder %s22, 1
      %p81 = por %p79, %p80
      %p82 = scmp.ne.s32.totalorder %s74, %s77
      %p83 = scmp.eq.s32.totalorder %s22, 0
      %p84 = por %p82, %p83
      %p85 = scmp.ne.s32.totalorder %s74, %s77
      %p86 = scmp.eq.s32.totalorder %s27, 1
      %p87 = por %p85, %p86
      %p88 = scmp.ne.s32.totalorder %s77, %s78
      %p89 = scmp.eq.s32.totalorder %s27, 0
      %p90 = por %p88, %p89
      %p91 = scmp.ne.s32.totalorder %s77, %s78
      %p92 = scmp.eq.s32.totalorder %s28, 1
      %p93 = por %p91, %p92
      %p95 = scmp.ne.s32.totalorder %s78, %s94
      %p96 = scmp.eq.s32.totalorder %s28, 0
      %p97 = por %p95, %p96
      %s98 = ssub.s32 %s29, %s41
      %s99 = ssub.s32 %s30, %s37
      %s100 = sor.u32 %s98, %s99
      %p101 = scmp.eq.s32.totalorder %s100, 0
      %s103 = sadd.s32 %s102, 1
      %s104 = scalar_select %p101, %s102, %s103
      %p107 = pneg %p101
      %p108 = scmp.eq.s32.totalorder %s22, 1
      %p109 = por %p107, %p108
      %p110 = scmp.ne.s32.totalorder %s102, %s105
      %p111 = scmp.eq.s32.totalorder %s22, 0
      %p112 = por %p110, %p111
      %p113 = scmp.ne.s32.totalorder %s102, %s105
      %p114 = scmp.eq.s32.totalorder %s27, 1
      %p115 = por %p113, %p114
      %p116 = scmp.ne.s32.totalorder %s105, %s106
      %p117 = scmp.eq.s32.totalorder %s27, 0
      %p118 = por %p116, %p117
      %p119 = scmp.ne.s32.totalorder %s105, %s106
      %p120 = scmp.eq.s32.totalorder %s28, 1
      %p121 = por %p119, %p120
      %p123 = scmp.ne.s32.totalorder %s106, %s122
      %p124 = scmp.eq.s32.totalorder %s28, 0
      %p125 = por %p123, %p124
      %s126 = ssub.s32 %s29, %s41
      %s127 = ssub.s32 %s30, %s37
      %s128 = sor.u32 %s126, %s127
      %p129 = scmp.eq.s32.totalorder %s128, 0
      %s131 = sadd.s32 %s130, 1
      %s132 = scalar_select %p129, %s130, %s131
      %p135 = pneg %p129
      %p136 = scmp.eq.s32.totalorder %s22, 1
      %p137 = por %p135, %p136
      %p138 = scmp.ne.s32.totalorder %s130, %s133
      %p139 = scmp.eq.s32.totalorder %s22, 0
      %p140 = por %p138, %p139
      %p141 = scmp.ne.s32.totalorder %s130, %s133
      %p142 = scmp.eq.s32.totalorder %s27, 1
      %p143 = por %p141, %p142
      %p144 = scmp.ne.s32.totalorder %s133, %s134
      %p145 = scmp.eq.s32.totalorder %s27, 0
      %p146 = por %p144, %p145
      %p147 = scmp.ne.s32.totalorder %s133, %s134
      %p148 = scmp.eq.s32.totalorder %s28, 1
      %p149 = por %p147, %p148
      %p151 = scmp.ne.s32.totalorder %s134, %s150
      %p152 = scmp.eq.s32.totalorder %s28, 0
      %p153 = por %p151, %p152
      %p154 = scmp.le.s32.totalorder 1, %s22
      %p155 = scmp.lt.s32.totalorder %s22, 3
      %p156 = pnand %p154, %p155
      %p157 = pneg %p156
      // Predicated region
      $region9: #{tpu_custom_call.1} parent=5 // pred_check
        _
      $region10: #{tpu_custom_call.1} parent=5 // pred_check_branch
        %159 = sbr.rel (%p156) target = $region12
      $region11: #{tpu_custom_call.1} parent=5 // pred_region
        %s160 = ssub.s32 %s22, 1
      $region12: #{tpu_custom_call.1} parent=5 // pred_fallthru
        _
      %p161 = scmp.lt.s32.totalorder %s22, 2
      // Predicated region
      $region13: #{tpu_custom_call.1} parent=5 // pred_check
        %p162 = pneg %p161
      $region14: #{tpu_custom_call.1} parent=5 // pred_check_branch
        %164 = sbr.rel (%p162) target = $region16
      $region15: #{tpu_custom_call.1} parent=5 // pred_region
        // Predicated region
        $region17: #{tpu_custom_call.1} parent=15 // pred_check
          %p165 = pneg %p56
        $region18: #{tpu_custom_call.1} parent=15 // pred_check_branch
          %167 = sbr.rel (%p165) target = $region20
        $region19: #{tpu_custom_call.1} parent=15 // pred_region
          %s168 = sand.u32 %s46, 1
          %s169 = scalar_lea.sflag [#allocation3], %s168
          %s170 = sand.u32 %s46, 1
          %s171 = smul.addr %s170, 32
          %s172 = scalar_lea.vmem [#allocation2], %s171
          %s173 = smul.u32 4, %s29
          %175 = vsyncadd %s169, 0
          %s176 = sadd.s32 %s30, %s173
          %s177 = smul.addr %s176, 8
          %s178 = scalar_lea.hbm %s0, %s177
          %s179 = sshll.u32 %s178, 4
          %s180 = int_to_ptr.hbm [resolvable:$true] %s179
          %s181 = sshll.u32 %s172, 4
          %s182 = int_to_ptr.vmem [resolvable:$true] %s181
          %187 = dma.hbm_to_vmem [thread:$0]  %s180, 512, %s182, %s169, 128, 128, 8
        $region20: #{tpu_custom_call.1} parent=15 // pred_fallthru
          _
        // Predicated region
        $region21: #{tpu_custom_call.1} parent=15 // pred_check
          %p188 = pneg %p84
        $region22: #{tpu_custom_call.1} parent=15 // pred_check_branch
          %190 = sbr.rel (%p188) target = $region24
        $region23: #{tpu_custom_call.1} parent=15 // pred_region
          %s191 = sand.u32 %s74, 1
          %s192 = scalar_lea.sflag [#allocation6], %s191
          %s193 = sand.u32 %s74, 1
          %s194 = smul.addr %s193, 32
          %s195 = scalar_lea.vmem [#allocation5], %s194
          %s196 = smul.u32 4, %s29
          %198 = vsyncadd %s192, 0
          %s199 = sadd.s32 %s30, %s196
          %s200 = smul.addr %s199, 8
          %s201 = scalar_lea.hbm %s1, %s200
          %s202 = sshll.u32 %s201, 4
          %s203 = int_to_ptr.hbm [resolvable:$true] %s202
          %s204 = sshll.u32 %s195, 4
          %s205 = int_to_ptr.vmem [resolvable:$true] %s204
          %210 = dma.hbm_to_vmem [thread:$0]  %s203, 512, %s205, %s192, 128, 128, 8
        $region24: #{tpu_custom_call.1} parent=15 // pred_fallthru
          _
      $region16: #{tpu_custom_call.1} parent=5 // pred_fallthru
        _
      %p211 = scmp.le.s32.totalorder 1, %s22
      %p212 = scmp.lt.s32.totalorder %s22, 3
      %p213 = pnand %p211, %p212
      %p214 = pneg %p213
      // Predicated region
      $region25: #{tpu_custom_call.1} parent=5 // pred_check
        _
      $region26: #{tpu_custom_call.1} parent=5 // pred_check_branch
        %216 = sbr.rel (%p213) target = $region28
      $region27: #{tpu_custom_call.1} parent=5 // pred_region
        %s217 = ssub.s32 %s22, 1
        %s218 = sand.u32 %s49, 1
        %s219 = scalar_lea.sflag [#allocation3], %s218
        %s220 = sand.u32 %s49, 1
        %s221 = smul.addr %s220, 32
        %s222 = scalar_lea.vmem [#allocation2], %s221
        // Predicated region
        $region29: #{tpu_custom_call.1} parent=27 // pred_check
          %p223 = pneg %p62
        $region30: #{tpu_custom_call.1} parent=27 // pred_check_branch
          %225 = sbr.rel (%p223) target = $region32
        $region31: #{tpu_custom_call.1} parent=27 // pred_region
          %227 = dma.done %s219, 512
        $region32: #{tpu_custom_call.1} parent=27 // pred_fallthru
          _
        %s228 = sand.u32 %s77, 1
        %s229 = scalar_lea.sflag [#allocation6], %s228
        %s230 = sand.u32 %s77, 1
        %s231 = smul.addr %s230, 32
        %s232 = scalar_lea.vmem [#allocation5], %s231
        // Predicated region
        $region33: #{tpu_custom_call.1} parent=27 // pred_check
          %p233 = pneg %p90
        $region34: #{tpu_custom_call.1} parent=27 // pred_check_branch
          %235 = sbr.rel (%p233) target = $region36
        $region35: #{tpu_custom_call.1} parent=27 // pred_region
          %237 = dma.done %s229, 512
        $region36: #{tpu_custom_call.1} parent=27 // pred_fallthru
          _
        %s238 = sand.u32 %s49, 1
        %s239 = scalar_lea.sflag [#allocation3], %s238
        %s240 = sand.u32 %s49, 1
        %s241 = smul.addr %s240, 32
        %s242 = scalar_lea.vmem [#allocation2], %s241
        %p243 = pneg %p62
        %p244 = pneg %p59
        %s245 = sand.u32 %s77, 1
        %s246 = scalar_lea.sflag [#allocation6], %s245
        %s247 = sand.u32 %s77, 1
        %s248 = smul.addr %s247, 32
        %s249 = scalar_lea.vmem [#allocation5], %s248
        %p250 = pneg %p90
        %p251 = pneg %p87
        %p252 = pneg %p118
        %p253 = pneg %p115
        %s254 = sand.u32 %s105, 1
        %s255 = scalar_lea.sflag [#allocation4], %s254
        %s256 = sand.u32 %s105, 1
        %s257 = smul.addr %s256, 32
        %s258 = scalar_lea.vmem [#allocation7], %s257
        %p259 = pneg %p146
        %p260 = pneg %p143
        %s261 = sand.u32 %s133, 1
        %s262 = scalar_lea.sflag [#allocation9], %s261
        %s263 = sand.u32 %s133, 1
        %s264 = smul.addr %s263, 32
        %s265 = scalar_lea.vmem [#allocation8], %s264
        %s266 = smul.u32 4, %s31
        %s267 = smul.u32 4, %s31
        %s268 = smul.u32 4, %s31
        %s269 = smul.u32 4, %s31
        %v270 = vld [vmem:[%s222] sm:$0xff]
        %v271 = vld [vmem:[%s222 + $0x8] sm:$0xff]
        %v272 = vld [vmem:[%s222 + $0x10] sm:$0xff]
        %v273 = vld [vmem:[%s222 + $0x18] sm:$0xff]
        %v274 = vld [vmem:[%s232] sm:$0xff]
        %v275 = vld [vmem:[%s232 + $0x8] sm:$0xff]
        %v276 = vld [vmem:[%s232 + $0x10] sm:$0xff]
        %v277 = vld [vmem:[%s232 + $0x18] sm:$0xff]
        %vm278 = vcmp.ge.f32.partialorder %v270, 0.0
        %vm279 = vcmp.ge.f32.partialorder %v271, 0.0
        %vm280 = vcmp.ge.f32.partialorder %v272, 0.0
        %vm281 = vcmp.ge.f32.partialorder %v273, 0.0
        %v282 = vsel %vm278, 1, 0
        %v283 = vsel %vm279, 1, 0
        %v284 = vsel %vm280, 1, 0
        %v285 = vsel %vm281, 1, 0
        %v286 = vcvt.s32.f32 %v282
        %v287 = vcvt.s32.f32 %v283
        %v288 = vcvt.s32.f32 %v284
        %v289 = vcvt.s32.f32 %v285
        %v290 = vmul.f32 %v286, %v270
        %v291 = vmul.f32 %v287, %v271
        %v292 = vmul.f32 %v288, %v272
        %v293 = vmul.f32 %v289, %v273
        %294 = vst [vmem:[%s258] sm:$0xff] %v290
        %295 = vst [vmem:[%s258 + $0x8] sm:$0xff] %v291
        %296 = vst [vmem:[%s258 + $0x10] sm:$0xff] %v292
        %297 = vst [vmem:[%s258 + $0x18] sm:$0xff] %v293
        %v298 = vmul.f32 %v286, %v274
        %v299 = vmul.f32 %v287, %v275
        %v300 = vmul.f32 %v288, %v276
        %v301 = vmul.f32 %v289, %v277
        %302 = vst [vmem:[%s265] sm:$0xff] %v298
        %303 = vst [vmem:[%s265 + $0x8] sm:$0xff] %v299
        %304 = vst [vmem:[%s265 + $0x10] sm:$0xff] %v300
        %305 = vst [vmem:[%s265 + $0x18] sm:$0xff] %v301
        %s306 = sand.u32 %s105, 1
        %s307 = scalar_lea.sflag [#allocation4], %s306
        %s308 = sand.u32 %s105, 1
        %s309 = smul.addr %s308, 32
        %s310 = scalar_lea.vmem [#allocation7], %s309
        %s311 = sand.u32 %s133, 1
        %s312 = scalar_lea.sflag [#allocation9], %s311
        %s313 = sand.u32 %s133, 1
        %s314 = smul.addr %s313, 32
        %s315 = scalar_lea.vmem [#allocation8], %s314
        // Predicated region
        $region37: #{tpu_custom_call.1} parent=27 // pred_check
          %p316 = pneg %p115
        $region38: #{tpu_custom_call.1} parent=27 // pred_check_branch
          %318 = sbr.rel (%p316) target = $region40
        $region39: #{tpu_custom_call.1} parent=27 // pred_region
          %s319 = smul.u32 4, %s31
          %321 = vsyncadd %s307, 0
          %s322 = sadd.s32 %s32, %s319
          %s323 = smul.addr %s322, 8
          %s324 = scalar_lea.hbm %s2, %s323
          %s325 = sshll.u32 %s310, 4
          %s326 = int_to_ptr.vmem [resolvable:$true] %s325
          %s327 = sshll.u32 %s324, 4
          %s328 = int_to_ptr.hbm [resolvable:$true] %s327
          %333 = dma.vmem_to_hbm [thread:$0]  %s326, 512, %s328, %s307, 128, 128, 8
        $region40: #{tpu_custom_call.1} parent=27 // pred_fallthru
          _
        // Predicated region
        $region41: #{tpu_custom_call.1} parent=27 // pred_check
          %p334 = pneg %p143
        $region42: #{tpu_custom_call.1} parent=27 // pred_check_branch
          %336 = sbr.rel (%p334) target = $region44
        $region43: #{tpu_custom_call.1} parent=27 // pred_region
          %s337 = smul.u32 4, %s31
          %339 = vsyncadd %s312, 0
          %s340 = sadd.s32 %s32, %s337
          %s341 = smul.addr %s340, 8
          %s342 = scalar_lea.hbm %s3, %s341
          %s343 = sshll.u32 %s315, 4
          %s344 = int_to_ptr.vmem [resolvable:$true] %s343
          %s345 = sshll.u32 %s342, 4
          %s346 = int_to_ptr.hbm [resolvable:$true] %s345
          %351 = dma.vmem_to_hbm [thread:$0]  %s344, 512, %s346, %s312, 128, 128, 8
        $region44: #{tpu_custom_call.1} parent=27 // pred_fallthru
          _
      $region28: #{tpu_custom_call.1} parent=5 // pred_fallthru
        _
      %p352 = scmp.le.s32.totalorder 2, %s22
      // Predicated region
      $region45: #{tpu_custom_call.1} parent=5 // pred_check
        %p353 = pneg %p352
      $region46: #{tpu_custom_call.1} parent=5 // pred_check_branch
        %355 = sbr.rel (%p353) target = $region48
      $region47: #{tpu_custom_call.1} parent=5 // pred_region
        %s356 = ssub.s32 %s22, 2
        // Predicated region
        $region49: #{tpu_custom_call.1} parent=47 // pred_check
          %p357 = pneg %p121
        $region50: #{tpu_custom_call.1} parent=47 // pred_check_branch
          %359 = sbr.rel (%p357) target = $region52
        $region51: #{tpu_custom_call.1} parent=47 // pred_region
          %s360 = sand.u32 %s106, 1
          %s361 = scalar_lea.sflag [#allocation4], %s360
          %s362 = sand.u32 %s106, 1
          %s363 = smul.addr %s362, 32
          %s364 = scalar_lea.vmem [#allocation7], %s363
          %366 = dma.done %s361, 512
        $region52: #{tpu_custom_call.1} parent=47 // pred_fallthru
          _
        // Predicated region
        $region53: #{tpu_custom_call.1} parent=47 // pred_check
          %p367 = pneg %p149
        $region54: #{tpu_custom_call.1} parent=47 // pred_check_branch
          %369 = sbr.rel (%p367) target = $region56
        $region55: #{tpu_custom_call.1} parent=47 // pred_region
          %s370 = sand.u32 %s134, 1
          %s371 = scalar_lea.sflag [#allocation9], %s370
          %s372 = sand.u32 %s134, 1
          %s373 = smul.addr %s372, 32
          %s374 = scalar_lea.vmem [#allocation8], %s373
          %376 = dma.done %s371, 512
        $region56: #{tpu_custom_call.1} parent=47 // pred_fallthru
          _
      $region48: #{tpu_custom_call.1} parent=5 // pred_fallthru
        _
    $region6: #{tpu_custom_call.1} parent=1 // loop_footer
      %s26 = sadd.s32 1, %s22
    $region7: #{tpu_custom_call.1} parent=1 // loop_footer_branch
      %21 = sbr.rel target = $region3
    $region8: #{tpu_custom_call.1} parent=1 // loop_exit
      _
    %377 = vsyncpa [#allocation3], 1
    %s378 = scalar_lea.sflag [#allocation3], 1
    %379 = vsyncpa %s378, 1
    %380 = vsyncpa [#allocation6], 1
    %s381 = scalar_lea.sflag [#allocation6], 1
    %382 = vsyncpa %s381, 1
    %383 = vsyncpa [#allocation4], 1
    %s384 = scalar_lea.sflag [#allocation4], 1
    %385 = vsyncpa %s384, 1
    %386 = vsyncpa [#allocation9], 1
    %s387 = scalar_lea.sflag [#allocation9], 1
    %388 = vsyncpa %s387, 1

</llo_original>
